<compile_context>
chip_gen: v5e
topology: v5e:2x2
jax: 0.10.0
libtpu: 0.0.40
codegen_flags: <defaults>
</compile_context>

<pallas_src>
import functools

import jax
import jax.numpy as jnp
from jax import lax
from jax.experimental import pallas as pl
from jax.experimental.pallas import tpu as pltpu

BN_EPS = 1e-5
LANE = 128
PAD_DIST2 = 1e30   # squared-distance bias that zeroes padded / self columns
FE_TB_MAX = 1024   # batch tile for the feature pipeline


def _round_up(n, m):
    return ((n + m - 1) // m) * m


def _pad2(a, rows, cols):
    return jnp.pad(a, ((0, rows - a.shape[0]), (0, cols - a.shape[1])))


def _tpu_flavor():
    """(bf16 transcendentals ok, physical VMEM bytes)."""
    try:
        vmem = int(pltpu.get_tpu_info().vmem_capacity_bytes)
    except Exception:
        vmem = 64 << 20  # conservative (v7x-sized) fallback
    try:
        kind = jax.devices()[0].device_kind.lower()
    except Exception:
        kind = ""
    # v2-v5 have no bf16 EUP/VPU path; v6e / v7x do (review item).
    old_gen = any(tag in kind for tag in ("v2", "v3", "v4", "v5"))
    return (not old_gen), vmem


def _clamp_vmem(estimate, budget):
    return int(min(max(estimate, 16 << 20), int(budget * 0.9)))


# ---------------------------------------------------------------------------
# Feature pipeline: Linear -> BatchNorm1d(train) -> Linear -> tanh
# Tiled over the batch (review item: the ungridded kernel OOMs at large B on
# v7x).  BN statistics are a full-batch reduction, computed between the two
# pallas_calls as glue.
# TODO(synk): could be fused into one two-phase grid (pass 0 accumulates
#             sum/sumsq, pass 1 applies BN+Linear+tanh) to avoid the feat
#             HBM round-trip.
# ---------------------------------------------------------------------------
def _fe_linear_kernel(x_ref, w_ref, b_ref, out_ref):
    # bf16 MXU operands, f32 accumulation (review item).
    out_ref[...] = (jnp.dot(x_ref[...].astype(jnp.bfloat16), w_ref[...],
                            preferred_element_type=jnp.float32) + b_ref[...])


def _bn_linear_tanh_kernel(feat_ref, a_ref, c_ref, w_ref, b_ref, out_ref):
    # Folded BatchNorm: z = feat * a + c   (a = gamma*rsqrt(var+eps), c = beta - mean*a)
    z = feat_ref[...] * a_ref[...] + c_ref[...]
    h = jnp.tanh(jnp.dot(z.astype(jnp.bfloat16), w_ref[...],
                         preferred_element_type=jnp.float32) + b_ref[...])
    out_ref[...] = h.astype(out_ref.dtype)


def feature_pipeline(x, wfe_b, bfe, gamma, beta, w1_b, b1, *, vmem_budget):
    B, D = x.shape
    Fp = wfe_b.shape[1]
    Hp = w1_b.shape[1]

    if B <= FE_TB_MAX:
        tb, b_pad = B, B
    else:
        nb = -(-B // FE_TB_MAX)
        tb = _round_up(-(-B // nb), 8)
        b_pad = tb * nb
    nb = b_pad // tb
    x_p = jnp.pad(x, ((0, b_pad - B), (0, 0)))     # D_in kept un-padded (review item)

    vmem_a = _clamp_vmem(2 * (tb * D * 4 + tb * Fp * 4) + D * Fp * 2 + Fp * 4
                         + (4 << 20), vmem_budget)
    feat = pl.pallas_call(
        _fe_linear_kernel,
        out_shape=jax.ShapeDtypeStruct((b_pad, Fp), jnp.float32),
        grid=(nb,),
        in_specs=[pl.BlockSpec((tb, D), lambda i: (i, 0)),
                  pl.BlockSpec((D, Fp), lambda i: (0, 0)),
                  pl.BlockSpec((1, Fp), lambda i: (0, 0))],
        out_specs=pl.BlockSpec((tb, Fp), lambda i: (i, 0)),
        compiler_params=pltpu.CompilerParams(
            dimension_semantics=("parallel",), vmem_limit_bytes=vmem_a),
    )(x_p, wfe_b, bfe)

    # BatchNorm1d training-mode statistics (biased variance) over the real rows.
    feat_r = feat[:B]
    mean = jnp.mean(feat_r, axis=0, keepdims=True)
    var = jnp.mean(jnp.square(feat_r - mean), axis=0, keepdims=True)
    a = gamma * lax.rsqrt(var + BN_EPS)
    c = beta - mean * a

    vmem_b = _clamp_vmem(2 * (tb * Fp * 4 + tb * Hp * 4) + Fp * Hp * 2
                         + 2 * Fp * 4 + Hp * 4 + (4 << 20), vmem_budget)
    h = pl.pallas_call(
        _bn_linear_tanh_kernel,
        out_shape=jax.ShapeDtypeStruct((b_pad, Hp), jnp.float32),
        grid=(nb,),
        in_specs=[pl.BlockSpec((tb, Fp), lambda i: (i, 0)),
                  pl.BlockSpec((1, Fp), lambda i: (0, 0)),
                  pl.BlockSpec((1, Fp), lambda i: (0, 0)),
                  pl.BlockSpec((Fp, Hp), lambda i: (0, 0)),
                  pl.BlockSpec((1, Hp), lambda i: (0, 0))],
        out_specs=pl.BlockSpec((tb, Hp), lambda i: (i, 0)),
        compiler_params=pltpu.CompilerParams(
            dimension_semantics=("parallel",), vmem_limit_bytes=vmem_b),
    )(feat, a, c, w1_b, b1)
    return h[:B]


# ---------------------------------------------------------------------------
# NONA euclidean predictor.
#   d2   = |x|^2 + |x_n|^2 - 2 x.x_n      (bf16 MXU gram, f32 elsewhere)
#   diag masked in d2 (gated on a scalar predicate)
#   softmax(-sqrt(d2)) row-wise; denominator comes from an all-ones label col.
# ---------------------------------------------------------------------------
def _mask_self_d2(d2, flag_ref, q0, n0, same_mode):
    """torch.equal(x, x_n) diagonal mask, applied to d2 (=> sim -inf).

    Gated on a scalar predicate so grid steps that cannot contain the diagonal
    pay no per-element VALU work (review item); trace-time specialized away
    entirely when sameness is statically False.
    """
    if same_mode == "false":
        return d2
    tb, tn = d2.shape
    has_diag = jnp.logical_and(q0 < n0 + tn, n0 < q0 + tb)
    if same_mode == "dynamic":
        has_diag = jnp.logical_and(has_diag, flag_ref[0] == 1)

    def _apply(d):
        row = q0 + lax.broadcasted_iota(jnp.int32, d.shape, 0)
        col = n0 + lax.broadcasted_iota(jnp.int32, d.shape, 1)
        return jnp.where(row == col, PAD_DIST2, d)

    return lax.cond(has_diag, _apply, lambda d: d, d2)


def _nona_single_kernel(flag_ref, x_ref, x2_ref, xn_ref, xn2_ref, y_ref, out_ref,
                        *, tb, ones_col, same_mode, cdt):
    """Whole neighbor set resident in VMEM: single-pass softmax per query tile."""
    q0 = pl.program_id(0) * tb
    # NT dot_general: no explicit transpose of the neighbor tile (review item).
    gram = lax.dot_general(x_ref[...], xn_ref[...], (((1,), (1,)), ((), ())),
                           preferred_element_type=jnp.float32)
    d2 = jnp.maximum(x2_ref[...] + xn2_ref[...] - 2.0 * gram, 0.0)
    d2 = _mask_self_d2(d2, flag_ref, q0, 0, same_mode)
    # row max of sim == -sqrt(row min of d2); the reduction stays f32.
    neg_m = jnp.sqrt(jnp.min(d2, axis=1, keepdims=True))
    # The only (tb, tn) transcendentals: sqrt + exp, in bf16 on v6e/v7x.
    p = jnp.exp(neg_m.astype(cdt) - jnp.sqrt(d2.astype(cdt)))
    # Vote matmul; y carries an all-ones column so vote[:, ones_col] is the
    # softmax denominator (numerator/denominator use identical bf16 p values).
    vote = jnp.dot(p.astype(jnp.bfloat16), y_ref[...],
                   preferred_element_type=jnp.float32)
    l = vote[:, ones_col:ones_col + 1]
    out_ref[...] = jnp.clip(vote / l, 0.0, 1.0).astype(out_ref.dtype)


def _nona_tiled_kernel(flag_ref, x_ref, x2_ref, xn_ref, xn2_ref, y_ref, out_ref,
                       m_sc, acc_sc, *, tb, tn, ones_col, same_mode, cdt):
    """Flash-style online softmax over neighbor blocks (large N)."""
    ni = pl.program_id(1)

    @pl.when(ni == 0)
    def _():
        m_sc[...] = jnp.full_like(m_sc, -jnp.inf)
        acc_sc[...] = jnp.zeros_like(acc_sc)

    gram = lax.dot_general(x_ref[...], xn_ref[...], (((1,), (1,)), ((), ())),
                           preferred_element_type=jnp.float32)
    d2 = jnp.maximum(x2_ref[...] + xn2_ref[...] - 2.0 * gram, 0.0)
    d2 = _mask_self_d2(d2, flag_ref, pl.program_id(0) * tb, ni * tn, same_mode)

    m_prev = m_sc[...]
    m_tile = -jnp.sqrt(jnp.min(d2, axis=1, keepdims=True))        # f32 (tb, 1)
    m_new = jnp.maximum(m_prev, m_tile)
    alpha = jnp.exp(m_prev - m_new)                               # f32 (tb, 1)
    # sim - m_new = (-m_new) - sqrt(d2); transcendentals in cdt (bf16 on v6e/v7x).
    p = jnp.exp((-m_new).astype(cdt) - jnp.sqrt(d2.astype(cdt)))
    # acc[:, ones_col] accumulates the softmax denominator alongside the votes.
    acc_sc[...] = alpha * acc_sc[...] + jnp.dot(
        p.astype(jnp.bfloat16), y_ref[...], preferred_element_type=jnp.float32)
    m_sc[...] = m_new

    @pl.when(ni == pl.num_programs(1) - 1)
    def _():
        acc = acc_sc[...]
        l = acc[:, ones_col:ones_col + 1]
        out_ref[...] = jnp.clip(acc / l, 0.0, 1.0).astype(out_ref.dtype)


def nona_predict(h, h_n, y_ohe, *, same_mode, same_flag, bf16_eup, vmem_budget):
    B, Hp = h.shape
    N = h_n.shape[0]
    C = y_ohe.shape[1]
    Cp = _round_up(C + 1, LANE)       # +1 reserves a lane for the ones/denominator column
    ones_col = C
    cdt = jnp.bfloat16 if bf16_eup else jnp.float32

    # Roofline-guided tiles: tb is the arithmetic-intensity knob (neighbors are
    # re-streamed once per query block).  v7x keeps tb <= 512 so batches > 512
    # give >= 2 "parallel" query blocks for its two TensorCores.
    if vmem_budget >= (96 << 20):      # v5e / v6e class (128 MiB physical VMEM)
        tb_max, tn_max = 1024, 512
    else:                              # v7x class (64 MiB physical VMEM)
        tb_max, tn_max = 512, 512

    # Balanced tiles: padding waste < one tile of rows / < 128 neighbor columns.
    if B <= tb_max:
        tb, b_pad = B, B
    else:
        nq = -(-B // tb_max)
        tb = _round_up(-(-B // nq), 8)
        b_pad = tb * nq
    if N <= tn_max:
        tn, n_pad = N, N
    else:
        nn_ = -(-N // tn_max)
        tn = _round_up(-(-N // nn_), LANE)
        n_pad = tn * nn_

    # bf16 MXU operands; norms computed from the bf16-rounded values so the
    # quadratic expansion stays internally consistent.
    # TODO(synk): the bf16 gram loses precision for near-duplicate points; use
    #             an f32 gram if tight parity with the f64 torch reference matters.
    h_q = _pad2(h, b_pad, Hp).astype(jnp.bfloat16)
    h_nb = _pad2(h_n, n_pad, Hp).astype(jnp.bfloat16)
    x2 = jnp.sum(jnp.square(h_q.astype(jnp.float32)), axis=1, keepdims=True)
    xn2 = jnp.sum(jnp.square(h_nb.astype(jnp.float32)), axis=1, keepdims=True).T
    # Padded neighbor columns -> huge squared distance -> softmax weight exactly 0.
    xn2 = jnp.where(jnp.arange(n_pad)[None, :] < N, xn2, PAD_DIST2)
    y_p = _pad2(y_ohe, n_pad, Cp)
    y_p = y_p.at[:N, ones_col].set(1.0)            # denominator column (real rows only)
    y_p = y_p.astype(jnp.bfloat16)

    if same_flag is None:
        same_flag = jnp.zeros((1,), jnp.int32)     # unused placeholder for static modes

    q_blocks = b_pad // tb
    n_blocks = n_pad // tn

    # Right-sized VMEM limit: double-buffered tiles + (tb, tn) temporaries + scratch.
    tile_bytes = 2 * (tb * Hp * 2 + tb * 4 + tn * Hp * 2 + tn * 4 + tn * Cp * 2
                      + tb * Cp * 4)
    tmp_bytes = 6 * tb * tn * 4
    scratch_bytes = tb * (Cp + 1) * 4
    vmem_limit = _clamp_vmem(tile_bytes + tmp_bytes + scratch_bytes + (4 << 20),
                             vmem_budget)

    if n_blocks == 1:
        # Neighbors + labels fully VMEM-resident: 1-D grid, single-pass softmax
        # (no online-softmax recurrence, no accumulator scratch).
        kernel = functools.partial(_nona_single_kernel, tb=tb, ones_col=ones_col,
                                   same_mode=same_mode, cdt=cdt)
        grid = (q_blocks,)
        in_specs = [
            pl.BlockSpec((tb, Hp), lambda qi, flag: (qi, 0)),
            pl.BlockSpec((tb, 1), lambda qi, flag: (qi, 0)),
            pl.BlockSpec((tn, Hp), lambda qi, flag: (0, 0)),
            pl.BlockSpec((1, tn), lambda qi, flag: (0, 0)),
            pl.BlockSpec((tn, Cp), lambda qi, flag: (0, 0)),
        ]
        out_specs = pl.BlockSpec((tb, Cp), lambda qi, flag: (qi, 0))
        scratch_shapes = []
        dims = ("parallel",)
    else:
        # TODO(synk): if a profile shows exposed DMA on the h_n / y streams, add
        #             pipeline_mode=pl.Buffered(3) on those two BlockSpecs.
        kernel = functools.partial(_nona_tiled_kernel, tb=tb, tn=tn,
                                   ones_col=ones_col, same_mode=same_mode, cdt=cdt)
        grid = (q_blocks, n_blocks)
        in_specs = [
            pl.BlockSpec((tb, Hp), lambda qi, ni, flag: (qi, 0)),
            pl.BlockSpec((tb, 1), lambda qi, ni, flag: (qi, 0)),
            pl.BlockSpec((tn, Hp), lambda qi, ni, flag: (ni, 0)),
            pl.BlockSpec((1, tn), lambda qi, ni, flag: (0, ni)),
            pl.BlockSpec((tn, Cp), lambda qi, ni, flag: (ni, 0)),
        ]
        out_specs = pl.BlockSpec((tb, Cp), lambda qi, ni, flag: (qi, 0))
        scratch_shapes = [
            pltpu.VMEM((tb, 1), jnp.float32),    # running max  m
            pltpu.VMEM((tb, Cp), jnp.float32),   # vote accumulator (incl. denominator col)
        ]
        dims = ("parallel", "arbitrary")

    out = pl.pallas_call(
        kernel,
        out_shape=jax.ShapeDtypeStruct((b_pad, Cp), jnp.float32),
        grid_spec=pltpu.PrefetchScalarGridSpec(
            num_scalar_prefetch=1,               # same_flag -> SMEM
            grid=grid,
            in_specs=in_specs,
            out_specs=out_specs,
            scratch_shapes=scratch_shapes,
        ),
        compiler_params=pltpu.CompilerParams(
            dimension_semantics=dims,
            vmem_limit_bytes=vmem_limit,
        ),
    )(same_flag, h_q, x2, h_nb, xn2, y_p)
    return out[:B, :C]


# ---------------------------------------------------------------------------
# Full NONA_FT forward (glue in plain JAX, hot path in the Pallas kernels)
# ---------------------------------------------------------------------------
def nona_ft_forward(params, x, x_n, y_n, classes):
    wfe, bfe, gamma, beta, w1, b1 = params
    bf16_eup, vmem_budget = _tpu_flavor()
    d_in, f = wfe.shape
    h_dim = w1.shape[1]
    f_pad = _round_up(f, LANE)
    h_pad = _round_up(h_dim, LANE)

    # Lane-dense parameter padding (exact: padded features stay identically 0
    # through Linear -> BatchNorm -> Linear -> tanh).  x's feature dim is NOT padded.
    wfe_b = jnp.pad(wfe, ((0, 0), (0, f_pad - f))).astype(jnp.bfloat16)
    bfe_p = _pad2(bfe, 1, f_pad)
    gamma_p = _pad2(gamma, 1, f_pad)
    beta_p = _pad2(beta, 1, f_pad)
    w1_b = _pad2(w1, f_pad, h_pad).astype(jnp.bfloat16)
    b1_p = _pad2(b1, 1, h_pad)

    def embed(inp):
        return feature_pipeline(inp, wfe_b, bfe_p, gamma_p, beta_p, w1_b, b1_p,
                                vmem_budget=vmem_budget)

    if x_n is x:
        # Trace-time identity: one feature-pipeline launch, static sameness
        # (torch.equal(h, h_n) is trivially True).
        h = embed(x)
        h_n = h
        same_mode, same_flag = "true", None
    else:
        h = embed(x)
        h_n = embed(x_n)
        if h.shape == h_n.shape:
            same_mode = "dynamic"
            same_flag = jnp.array_equal(h, h_n).astype(jnp.int32).reshape(1)
        else:
            same_mode, same_flag = "false", None

    # task == 'multiclass': one_hot(y_n)  (glue)
    y_ohe = jax.nn.one_hot(y_n, classes, dtype=jnp.float32)

    # NOTE: degenerate B == N == 1 with self-masking gives an all-masked row;
    # torch returns NaN there, this kernel returns the self label instead.
    return nona_predict(h, h_n, y_ohe, same_mode=same_mode, same_flag=same_flag,
                        bf16_eup=bf16_eup, vmem_budget=vmem_budget)


if __name__ == "__main__":
    D_in, F, H, C = 16, 32, 32, 4

    key = jax.random.PRNGKey(0)
    ks = jax.random.split(key, 8)

    # deterministic parameter init (shapes from the module's __init__)
    wfe = jax.random.normal(ks[0], (D_in, F), jnp.float32) / jnp.sqrt(D_in)   # fe Linear
    bfe = jax.random.normal(ks[1], (1, F), jnp.float32) * 0.01
    gamma = jnp.ones((1, F), jnp.float32)                                     # BatchNorm1d(F)
    beta = jnp.zeros((1, F), jnp.float32)
    w1 = jax.random.normal(ks[2], (F, H), jnp.float32) / jnp.sqrt(F)          # hidden Linear
    b1 = jax.random.normal(ks[3], (1, H), jnp.float32) * 0.01
    params = (wfe, bfe, gamma, beta, w1, b1)

    def check(out, b, c):
        out = jax.block_until_ready(out)
        assert out.shape == (b, c)
        assert bool(jnp.all(jnp.isfinite(out)))
        assert bool(jnp.all((out >= 0.0) & (out <= 1.0)))

    # 1) small batch, x_n is x (single-pass kernel + static self-masking)
    B = 8
    x = jax.random.normal(ks[4], (B, D_in), jnp.float32)
    y_n = jax.random.randint(ks[5], (B,), 0, C)
    check(nona_ft_forward(params, x, x, y_n, C), B, C)

    # 2) larger batch, x_n is x (exercises the tiled online-softmax kernel)
    B2 = 640
    x2 = jax.random.normal(ks[6], (B2, D_in), jnp.float32)
    y2 = jax.random.randint(ks[7], (B2,), 0, C)
    check(nona_ft_forward(params, x2, x2, y2, C), B2, C)

    # 3) distinct neighbor set of equal shape (dynamic sameness flag, no masking)
    xn3 = x + 0.5
    check(nona_ft_forward(params, x, xn3, y_n, C), B, C)

    print("KERNEL_OK")
</pallas_src>

<mosaic_0001>
module attributes {stable_mosaic.version = 11 : i64} {
  func.func @_fe_linear_kernel(%arg0: i32, %arg1: memref<8x16xf32, #tpu.memory_space<vmem>>, %arg2: memref<16x128xbf16, #tpu.memory_space<vmem>>, %arg3: memref<1x128xf32, #tpu.memory_space<vmem>>, %arg4: memref<8x128xf32, #tpu.memory_space<vmem>>) attributes {dimension_semantics = [#tpu.dimension_semantics<parallel>], iteration_bounds = array<i64: 1>, scalar_prefetch = 0 : i64, scratch_operands = 0 : i64, tpu.core_type = #tpu.core_type<tc>, window_params = [{transform_indices = @transform_0, window_bounds = array<i64: 8, 16>}, {pipeline_mode = #tpu.pipeline_mode<synchronous>, transform_indices = @transform_1, window_bounds = array<i64: 16, 128>}, {pipeline_mode = #tpu.pipeline_mode<synchronous>, transform_indices = @transform_2, window_bounds = array<i64: 1, 128>}, {transform_indices = @transform_3, window_bounds = array<i64: 8, 128>}]} {
    %c0 = arith.constant 0 : index
    %c0_0 = arith.constant 0 : index
    %0 = vector.load %arg1[%c0, %c0_0] : memref<8x16xf32, #tpu.memory_space<vmem>>, vector<8x16xf32>
    %1 = arith.truncf %0 : vector<8x16xf32> to vector<8x16xbf16>
    %c0_1 = arith.constant 0 : index
    %c0_2 = arith.constant 0 : index
    %2 = vector.load %arg2[%c0_1, %c0_2] : memref<16x128xbf16, #tpu.memory_space<vmem>>, vector<16x128xbf16>
    %cst = arith.constant dense<0.000000e+00> : vector<8x128xf32>
    %3 = tpu.matmul %1, %2, %cst {dimension_numbers = #tpu.dot_dimension_numbers<[1], [0], [0], [1], [0, 0, 1, 1], [], []>} : vector<8x16xbf16>, vector<16x128xbf16>, vector<8x128xf32> -> vector<8x128xf32>
    %c0_3 = arith.constant 0 : index
    %c0_4 = arith.constant 0 : index
    %4 = vector.load %arg3[%c0_3, %c0_4] : memref<1x128xf32, #tpu.memory_space<vmem>>, vector<1x128xf32>
    %5 = vector.broadcast %4 : vector<1x128xf32> to vector<8x128xf32>
    %6 = arith.addf %3, %5 : vector<8x128xf32>
    %c0_5 = arith.constant 0 : index
    %c0_6 = arith.constant 0 : index
    %7 = vector.load %arg4[%c0_5, %c0_6] : memref<8x128xf32, #tpu.memory_space<vmem>>, vector<8x128xf32>
    tpu.vector_store %arg4[%c0_5, %c0_6], %6 {strides = array<i32>} : memref<8x128xf32, #tpu.memory_space<vmem>>, vector<8x128xf32>,
    return
  }
  func.func @transform_0(%arg0: i32) -> (i32, i32) {
    %c0_i32 = arith.constant 0 : i32
    %c0_i32_0 = arith.constant 0 : i32
    return %arg0, %c0_i32 : i32, i32
  }
  func.func @transform_1(%arg0: i32) -> (i32, i32) {
    %c0_i32 = arith.constant 0 : i32
    %c0_i32_0 = arith.constant 0 : i32
    %c0_i32_1 = arith.constant 0 : i32
    return %c0_i32, %c0_i32_0 : i32, i32
  }
  func.func @transform_2(%arg0: i32) -> (i32, i32) {
    %c0_i32 = arith.constant 0 : i32
    %c0_i32_0 = arith.constant 0 : i32
    %c0_i32_1 = arith.constant 0 : i32
    return %c0_i32, %c0_i32_0 : i32, i32
  }
  func.func @transform_3(%arg0: i32) -> (i32, i32) {
    %c0_i32 = arith.constant 0 : i32
    %c0_i32_0 = arith.constant 0 : i32
    return %arg0, %c0_i32 : i32, i32
  }
}

</mosaic_0001>

<llo_original>
// kernel: tpu_custom_call.1
$region0: #{tpu_custom_call.1}
  #allocation0 [shape = 'u32[]', space=smem, size = 0x4, offset = 0x4, fixed_abs, tag = 'smem constant byte address 0x4 - core index']
  #allocation1 [shape = 'u32[72,128]{1,0:T(1,128)}', space=vmem, size = 0x9000, scoped, tag = 'internal scratch']
  %s0 = inlined_call_operand.hbm [shape: f32[8,16], index: 0, kind: input, shape index: {}]
  %s1 = inlined_call_operand.hbm [shape: bf16[16,128], index: 1, kind: input, shape index: {}]
  %s2 = inlined_call_operand.vmem [shape: f32[1,128], index: 2, kind: input, shape index: {}]
  %s3 = inlined_call_operand.hbm [shape: f32[8,128], index: 3, kind: output, shape index: {}]
  %s4 = sld [smem:[#allocation0]]
  $region30: #{tpu_custom_call.1} parent=0
    _
  %s6 = ssub.s32 1, %s4
  %s7 = scalar_select 0, %s6, %s4
  $region1: #{tpu_custom_call.1} parent=0
    #allocation2 [shape = 'u8[4096]{0}', space=vmem, size = 0x1000, scoped, tag = 'input window, operand 0, single buffered']
    #allocation3 [shape = 's32[1]{0}', space=sflag, size = 0x4, scoped, tag = 'scoped memory for tpu_custom_call.1']
    #allocation4 [shape = 's32[1]{0}', space=sflag, size = 0x4, scoped, tag = 'scoped memory for tpu_custom_call.1']
    #allocation5 [shape = 'u8[4096]{0}', space=vmem, size = 0x1000, scoped, tag = 'input window, operand 1, single buffered']
    #allocation6 [shape = 's32[1]{0}', space=sflag, size = 0x4, scoped, tag = 'scoped memory for tpu_custom_call.1']
    #allocation7 [shape = 'u8[4096]{0}', space=vmem, size = 0x1000, scoped, tag = 'output window, operand 0, single buffered']
    %8 = vsyncpa [#allocation3], 0
    %9 = vsyncpa [#allocation6], 0
    %10 = vsyncpa [#allocation4], 0
    // Predicated region
    $region2: #{tpu_custom_call.1} parent=1 // pred_check
      _
    $region3: #{tpu_custom_call.1} parent=1 // pred_check_branch
      %12 = sbr.rel (0) target = $region5
    $region4: #{tpu_custom_call.1} parent=1 // pred_region
      %14 = vsyncadd [#allocation3], 0
      %s16 = sshll.u32 %s0, 4
      %s17 = int_to_ptr.hbm [resolvable:$true] %s16
      %s18 = sshll.u32 [#allocation2], 4
      %s19 = int_to_ptr.vmem [resolvable:$true] %s18
      %21 = dma.hbm_to_vmem [thread:$0]  %s17, 128, %s19, [#allocation3]
    $region5: #{tpu_custom_call.1} parent=1 // pred_fallthru
      _
    // Predicated region
    $region6: #{tpu_custom_call.1} parent=1 // pred_check
      _
    $region7: #{tpu_custom_call.1} parent=1 // pred_check_branch
      %23 = sbr.rel (0) target = $region9
    $region8: #{tpu_custom_call.1} parent=1 // pred_region
      %25 = vsyncadd [#allocation6], 0
      %s26 = sshll.u32 %s1, 4
      %s27 = int_to_ptr.hbm [resolvable:$true] %s26
      %s28 = sshll.u32 [#allocation5], 4
      %s29 = int_to_ptr.vmem [resolvable:$true] %s28
      %34 = dma.hbm_to_vmem [thread:$0]  %s27, 128, %s29, [#allocation6], 64, 64, 4
    $region9: #{tpu_custom_call.1} parent=1 // pred_fallthru
      _
    // Predicated region
    $region10: #{tpu_custom_call.1} parent=1 // pred_check
      _
    $region11: #{tpu_custom_call.1} parent=1 // pred_check_branch
      %36 = sbr.rel (0) target = $region13
    $region12: #{tpu_custom_call.1} parent=1 // pred_region
      _
    $region13: #{tpu_custom_call.1} parent=1 // pred_fallthru
      _
    // Predicated region
    $region14: #{tpu_custom_call.1} parent=1 // pred_check
      _
    $region15: #{tpu_custom_call.1} parent=1 // pred_check_branch
      %38 = sbr.rel (0) target = $region17
    $region16: #{tpu_custom_call.1} parent=1 // pred_region
      %40 = dma.done [#allocation3], 128
    $region17: #{tpu_custom_call.1} parent=1 // pred_fallthru
      _
    // Predicated region
    $region18: #{tpu_custom_call.1} parent=1 // pred_check
      _
    $region19: #{tpu_custom_call.1} parent=1 // pred_check_branch
      %42 = sbr.rel (0) target = $region21
    $region20: #{tpu_custom_call.1} parent=1 // pred_region
      %44 = dma.done [#allocation6], 128
    $region21: #{tpu_custom_call.1} parent=1 // pred_fallthru
      _
    %v46 = vld [vmem:[#allocation2] sm:$0xff]
    %v47 = vpack.c.bf16 %v46, %v46
    %v48 = vld [vmem:[#allocation5] sm:$0xf]
    %v49 = vld [vmem:[#allocation5 + $0x4] sm:$0xf]
    %v50 = vld [vmem:[%s2] sm:$0x1]
    %v52 = vperm.slane %v50, 0
    %v56 = vunpack.c.l.b16 %v48
    %v57 = vunpack.c.l.b16 %v49
    %v58 = vpack.c.b16 %v57, %v56
    %vm60 = vcmask 130048
    %v62 = vsel %vm60, %v47, 0
    %64 = vmatpush.bf16.msra.mxu0 0
    %65 = vmatpush.bf16.msra.mxu0 0
    %66 = vmatpush.bf16.msra.mxu0 0
    %67 = vmatpush.bf16.msra.mxu0 0
    %68 = vmatpush.bf16.msra.mxu0 0
    %69 = vmatpush.bf16.msra.mxu0 0
    %70 = vmatpush.bf16.msra.mxu0 0
    %71 = vmatpush.bf16.msra.mxu0 %v58
    %72 = vmatmul.bf16.gmra.mxu0 %v62
    %v73 = vpop.f32.mrf.mxu0
    %v74 = vadd.f32 %v52, %v73
    %v75 = vpop.f32.mrf.mxu0
    %76 = vdwg.mxu0
    %77 = vst [vmem:[#allocation7] sm:$0xff] %v74
    // Predicated region
    $region22: #{tpu_custom_call.1} parent=1 // pred_check
      _
    $region23: #{tpu_custom_call.1} parent=1 // pred_check_branch
      %79 = sbr.rel (0) target = $region25
    $region24: #{tpu_custom_call.1} parent=1 // pred_region
      %81 = vsyncadd [#allocation4], 0
      %s83 = sshll.u32 [#allocation7], 4
      %s84 = int_to_ptr.vmem [resolvable:$true] %s83
      %s85 = sshll.u32 %s3, 4
      %s86 = int_to_ptr.hbm [resolvable:$true] %s85
      %88 = dma.vmem_to_hbm [thread:$0]  %s84, 128, %s86, [#allocation4]
    $region25: #{tpu_custom_call.1} parent=1 // pred_fallthru
      _
    // Predicated region
    $region26: #{tpu_custom_call.1} parent=1 // pred_check
      _
    $region27: #{tpu_custom_call.1} parent=1 // pred_check_branch
      %90 = sbr.rel (0) target = $region29
    $region28: #{tpu_custom_call.1} parent=1 // pred_region
      %92 = dma.done [#allocation4], 128
    $region29: #{tpu_custom_call.1} parent=1 // pred_fallthru
      _
    %93 = vsyncpa [#allocation3], 1
    %94 = vsyncpa [#allocation6], 1
    %95 = vsyncpa [#allocation4], 1

</llo_original>
